<compile_context>
chip_gen: v7x
topology: tpu7x:2x2x1
jax: 0.10.0
libtpu: 0.0.40
codegen_flags: <defaults>
</compile_context>

<pallas_src>
import jax
import jax.numpy as jnp
from jax import lax
from jax.experimental import pallas as pl
from jax.experimental.pallas import tpu as pltpu


def _round_up(v, m):
    return ((v + m - 1) // m) * m


def _vmem_capacity_bytes():
    """Per-core VMEM capacity; conservative (v7x) fallback if the query is unavailable."""
    try:
        return int(pltpu.get_tpu_info().vmem_capacity_bytes)
    except Exception:
        return 64 << 20


def _pick_tile(dim, cap, align):
    """Largest tile <= cap (multiple of `align`); prefer one that divides `dim` exactly
    (>= cap/2) so the wrapper does not need to pad/slice; otherwise return cap."""
    cap = max(align, (cap // align) * align)
    if dim <= cap:
        return _round_up(dim, align)
    t = cap
    lo = max(align, cap // 2)
    while t >= lo:
        if dim % t == 0:
            return t
        t -= align
    return cap


def _similarity_kernel(x_ref, yt_ref, sx_ref, sy_ref, o_ref):
    # x_ref : (tm, H)  native dtype (bf16 stays bf16 for the MXU)
    # yt_ref: (H, tn)  native dtype, pre-transposed in the wrapper
    # sx_ref: (tm, 1)  f32 = 1 / (temp * max(||x_i||, eps))
    # sy_ref: (1, tn)  f32 = 1 / max(||y_j||, eps)
    acc = jnp.dot(x_ref[...], yt_ref[...], preferred_element_type=jnp.float32)   # MXU
    o_ref[...] = (acc * sx_ref[...] * sy_ref[...]).astype(o_ref.dtype)           # f32 epilogue


def similarity(x, y, temp, eps=1e-8, *, tm=512, tn=256, mxu_dtype=None,
               out_dtype=jnp.float32):
    """Reproduces Similarity.forward(x, y) for x:(B,1,H), y:(1,B,H) -> (B,B)."""
    assert x.ndim == 3 and y.ndim == 3 and x.shape[1] == 1 and y.shape[0] == 1
    assert x.shape[-1] == y.shape[-1], "hidden dims must match for cosine sim"
    M, H = x.shape[0], x.shape[-1]
    N = y.shape[1]
    inv_temp = float(1.0 / temp)
    eps = float(eps)

    x2d = x.reshape(M, H)
    y2d = y.reshape(N, H)

    # ---- Precompute per-row inverse norms ONCE (f32), fold 1/temp into x's scale.
    # max(sum_sq, eps^2) == clamping the norm by eps, matching torch cosine_similarity.
    xf = x2d.astype(jnp.float32)
    yf = y2d.astype(jnp.float32)
    sx = inv_temp * lax.rsqrt(jnp.maximum(jnp.sum(xf * xf, -1, keepdims=True), eps * eps))
    sy = lax.rsqrt(jnp.maximum(jnp.sum(yf * yf, -1, keepdims=True), eps * eps))

    # Common MXU dtype (optionally force bf16 for f32 inputs: v5e/v6e throughput + DMA win).
    if x2d.dtype != y2d.dtype:
        ct = jnp.promote_types(x2d.dtype, y2d.dtype)
        x2d, y2d = x2d.astype(ct), y2d.astype(ct)
    if mxu_dtype is not None and x2d.dtype != jnp.dtype(mxu_dtype):
        x2d = x2d.astype(mxu_dtype)
        y2d = y2d.astype(mxu_dtype)

    in_bytes = jnp.dtype(x2d.dtype).itemsize
    out_bytes = jnp.dtype(out_dtype).itemsize
    row_align = {4: 8, 2: 16, 1: 32}.get(in_bytes, 8)   # sublane packing per dtype width

    # ---- VMEM-aware tile sizing (double-buffered operand/output blocks + scale vecs).
    vmem_cap = _vmem_capacity_bytes()
    budget = min(vmem_cap // 2, 40 << 20)
    vmem_limit = int(min((vmem_cap * 3) // 4, 112 << 20))

    def working_set(t_m, t_n):
        return (2 * t_m * H * in_bytes + 2 * H * t_n * in_bytes
                + 2 * t_m * t_n * out_bytes + 2 * (t_m + t_n) * 4)

    tm_cap = min(tm, _round_up(M, row_align))
    tn_cap = min(tn, _round_up(N, 128))
    while working_set(tm_cap, tn_cap) > budget and tm_cap >= 2 * max(row_align, 128):
        tm_cap = max(row_align, _round_up(tm_cap // 2, row_align))
    while working_set(tm_cap, tn_cap) > budget and tn_cap >= 256:
        tn_cap = max(128, _round_up(tn_cap // 2, 128))
    # (A K-split over H would be needed only for hidden dims so large that even the
    #  minimum tiles overflow VMEM; not implemented here.)

    tm_eff = _pick_tile(M, tm_cap, row_align)
    tn_eff = _pick_tile(N, tn_cap, 128)
    Mp = _round_up(M, tm_eff)
    Np = _round_up(N, tn_eff)

    # v7x megacore: if the whole problem is a single block, split M so a 2-block
    # "parallel" axis exists and both TensorCores get work.
    if (Mp // tm_eff == 1 and Np // tn_eff == 1
            and tm_eff >= 2 * max(row_align, 128) and tm_eff % (2 * row_align) == 0):
        tm_eff //= 2

    # Zero-pad tail rows AND their scales: padded rows/cols get scale 0 -> output is
    # exactly 0 there, and is sliced off below, so correctness is unaffected.
    if Mp != M:
        x2d = jnp.pad(x2d, ((0, Mp - M), (0, 0)))
        sx = jnp.pad(sx, ((0, Mp - M), (0, 0)))
    if Np != N:
        y2d = jnp.pad(y2d, ((0, Np - N), (0, 0)))
        sy = jnp.pad(sy, ((0, Np - N), (0, 0)))

    yt = y2d.T                # (H, Np): canonical MXU RHS layout, tn is the lane dim
    syr = sy.reshape(1, Np)   # row vector of y scales

    grid = (Mp // tm_eff, Np // tn_eff)

    out = pl.pallas_call(
        _similarity_kernel,
        out_shape=jax.ShapeDtypeStruct((Mp, Np), out_dtype),
        grid_spec=pltpu.PrefetchScalarGridSpec(
            num_scalar_prefetch=0,
            grid=grid,
            in_specs=[
                pl.BlockSpec((tm_eff, H), lambda i, j: (i, 0)),
                pl.BlockSpec((H, tn_eff), lambda i, j: (0, j)),
                pl.BlockSpec((tm_eff, 1), lambda i, j: (i, 0)),
                pl.BlockSpec((1, tn_eff), lambda i, j: (0, j)),
            ],
            out_specs=pl.BlockSpec((tm_eff, tn_eff), lambda i, j: (i, j)),
        ),
        compiler_params=pltpu.CompilerParams(
            dimension_semantics=("parallel", "parallel"),
            vmem_limit_bytes=vmem_limit,
        ),
    )(x2d, yt, sx, syr)

    if Mp != M or Np != N:
        out = out[:M, :N]
    return out


def similarity_ref(x, y, temp, eps=1e-8):
    """Pure-JAX reference mirroring torch cosine_similarity(dim=-1)(x, y) / temp."""
    xb, yb = jnp.broadcast_arrays(x.astype(jnp.float32), y.astype(jnp.float32))
    nx = jnp.maximum(jnp.linalg.norm(xb, axis=-1), eps)
    ny = jnp.maximum(jnp.linalg.norm(yb, axis=-1), eps)
    dot = jnp.sum(xb * yb, axis=-1)
    return dot / (nx * ny) / temp


if __name__ == "__main__":
    key = jax.random.PRNGKey(0)
    temp = 0.05  # typical SimCSE temperature

    # Small demo shape (launch-overhead bound at this size; the tiling pays off at
    # contrastive batch sizes M, N >= 128).
    B, H = 8, 128
    kx, ky = jax.random.split(key)
    x = jax.random.normal(kx, (B, 1, H), dtype=jnp.float32)   # (B, 1, H)
    y = jax.random.normal(ky, (1, B, H), dtype=jnp.float32)   # (1, B, H)

    out = jax.block_until_ready(similarity(x, y, temp))
    ref = similarity_ref(x, y, temp)
    assert out.shape == (B, B)
    assert jnp.allclose(out, ref, atol=1e-3, rtol=1e-3), "f32 mismatch vs reference"

    # bf16 path: inputs stay bf16 into the MXU; norms + epilogue scaling stay f32.
    xb16 = x.astype(jnp.bfloat16)
    yb16 = y.astype(jnp.bfloat16)
    out16 = jax.block_until_ready(similarity(xb16, yb16, temp))
    ref16 = similarity_ref(xb16, yb16, temp)
    assert out16.shape == (B, B)
    assert jnp.allclose(out16, ref16, atol=5e-2, rtol=1e-2), "bf16 mismatch vs reference"

    # Optional bf16-MXU path for f32 inputs (throughput/DMA win on v5e/v6e).
    outc = jax.block_until_ready(similarity(x, y, temp, mxu_dtype=jnp.bfloat16))
    assert jnp.allclose(outc, ref, atol=5e-1, rtol=5e-2), "bf16-MXU mismatch vs reference"

    print("KERNEL_OK")
</pallas_src>

<mosaic_0001>
module attributes {stable_mosaic.version = 11 : i64} {
  func.func @_similarity_kernel(%arg0: i32, %arg1: i32, %arg2: memref<8x128xf32, #tpu.memory_space<vmem>>, %arg3: memref<128x128xf32, #tpu.memory_space<vmem>>, %arg4: memref<8x1xf32, #tpu.memory_space<vmem>>, %arg5: memref<1x128xf32, #tpu.memory_space<vmem>>, %arg6: memref<8x128xf32, #tpu.memory_space<vmem>>) attributes {dimension_semantics = [#tpu.dimension_semantics<parallel>, #tpu.dimension_semantics<parallel>], iteration_bounds = array<i64: 1, 1>, scalar_prefetch = 0 : i64, scratch_operands = 0 : i64, tpu.core_type = #tpu.core_type<tc>, window_params = [{transform_indices = @transform_0, window_bounds = array<i64: 8, 128>}, {transform_indices = @transform_1, window_bounds = array<i64: 128, 128>}, {transform_indices = @transform_2, window_bounds = array<i64: 8, 1>}, {transform_indices = @transform_3, window_bounds = array<i64: 1, 128>}, {transform_indices = @transform_4, window_bounds = array<i64: 8, 128>}]} {
    %c0 = arith.constant 0 : index
    %c0_0 = arith.constant 0 : index
    %0 = vector.load %arg2[%c0, %c0_0] : memref<8x128xf32, #tpu.memory_space<vmem>>, vector<8x128xf32>
    %c0_1 = arith.constant 0 : index
    %c0_2 = arith.constant 0 : index
    %1 = vector.load %arg3[%c0_1, %c0_2] : memref<128x128xf32, #tpu.memory_space<vmem>>, vector<128x128xf32>
    %cst = arith.constant dense<0.000000e+00> : vector<8x128xf32>
    %2 = tpu.matmul %0, %1, %cst {dimension_numbers = #tpu.dot_dimension_numbers<[1], [0], [0], [1], [0, 0, 1, 1], [], []>} : vector<8x128xf32>, vector<128x128xf32>, vector<8x128xf32> -> vector<8x128xf32>
    %c0_3 = arith.constant 0 : index
    %c0_4 = arith.constant 0 : index
    %3 = vector.load %arg4[%c0_3, %c0_4] : memref<8x1xf32, #tpu.memory_space<vmem>>, vector<8x1xf32>
    %4 = vector.broadcast %3 : vector<8x1xf32> to vector<8x128xf32>
    %5 = arith.mulf %2, %4 : vector<8x128xf32>
    %c0_5 = arith.constant 0 : index
    %c0_6 = arith.constant 0 : index
    %6 = vector.load %arg5[%c0_5, %c0_6] : memref<1x128xf32, #tpu.memory_space<vmem>>, vector<1x128xf32>
    %7 = vector.broadcast %6 : vector<1x128xf32> to vector<8x128xf32>
    %8 = arith.mulf %5, %7 : vector<8x128xf32>
    %c0_7 = arith.constant 0 : index
    %c0_8 = arith.constant 0 : index
    %9 = vector.load %arg6[%c0_7, %c0_8] : memref<8x128xf32, #tpu.memory_space<vmem>>, vector<8x128xf32>
    tpu.vector_store %arg6[%c0_7, %c0_8], %8 {strides = array<i32>} : memref<8x128xf32, #tpu.memory_space<vmem>>, vector<8x128xf32>,
    return
  }
  func.func @transform_0(%arg0: i32, %arg1: i32) -> (i32, i32) {
    %c0_i32 = arith.constant 0 : i32
    %c0_i32_0 = arith.constant 0 : i32
    return %arg0, %c0_i32 : i32, i32
  }
  func.func @transform_1(%arg0: i32, %arg1: i32) -> (i32, i32) {
    %c0_i32 = arith.constant 0 : i32
    %c0_i32_0 = arith.constant 0 : i32
    return %c0_i32, %arg1 : i32, i32
  }
  func.func @transform_2(%arg0: i32, %arg1: i32) -> (i32, i32) {
    %c0_i32 = arith.constant 0 : i32
    %c0_i32_0 = arith.constant 0 : i32
    return %arg0, %c0_i32 : i32, i32
  }
  func.func @transform_3(%arg0: i32, %arg1: i32) -> (i32, i32) {
    %c0_i32 = arith.constant 0 : i32
    %c0_i32_0 = arith.constant 0 : i32
    return %c0_i32, %arg1 : i32, i32
  }
  func.func @transform_4(%arg0: i32, %arg1: i32) -> (i32, i32) {
    %c0_i32 = arith.constant 0 : i32
    return %arg0, %arg1 : i32, i32
  }
}

</mosaic_0001>

<llo_original>
// kernel: tpu_custom_call.1
$region0: #{tpu_custom_call.1}
  #allocation0 [shape = 'u32[]', space=smem, size = 0x4, offset = 0x4, fixed_abs, tag = 'smem constant byte address 0x4 - core index']
  #allocation1 [shape = 'u32[144,128]{1,0:T(1,128)}', space=vmem, size = 0x12000, scoped, tag = 'internal scratch']
  %s0 = inlined_call_operand.vmem [shape: f32[8,128], index: 0, kind: input, shape index: {}]
  %s1 = inlined_call_operand.hbm [shape: f32[128,128], index: 1, kind: input, shape index: {}]
  %s2 = inlined_call_operand.vmem [shape: f32[8,1], index: 2, kind: input, shape index: {}]
  %s3 = inlined_call_operand.vmem [shape: f32[1,128], index: 3, kind: input, shape index: {}]
  %s4 = inlined_call_operand.hbm [shape: f32[8,128], index: 4, kind: output, shape index: {}]
  %s5 = sld [smem:[#allocation0]]
  $region30: #{tpu_custom_call.1} parent=0
    _
  %s7 = ssub.s32 1, %s5
  %s8 = scalar_select 0, %s7, %s5
  $region1: #{tpu_custom_call.1} parent=0
    #allocation2 [shape = 'u8[65536]{0}', space=vmem, size = 0x10000, scoped, tag = 'input window, operand 1, single buffered']
    #allocation3 [shape = 's32[1]{0}', space=sflag, size = 0x4, scoped, tag = 'scoped memory for tpu_custom_call.1']
    #allocation4 [shape = 's32[1]{0}', space=sflag, size = 0x4, scoped, tag = 'scoped memory for tpu_custom_call.1']
    #allocation5 [shape = 'u8[4096]{0}', space=vmem, size = 0x1000, scoped, tag = 'output window, operand 0, single buffered']
    %9 = vsyncpa [#allocation3], 0
    %10 = vsyncpa [#allocation4], 0
    // Predicated region
    $region2: #{tpu_custom_call.1} parent=1 // pred_check
      _
    $region3: #{tpu_custom_call.1} parent=1 // pred_check_branch
      %12 = sbr.rel (0) target = $region5
    $region4: #{tpu_custom_call.1} parent=1 // pred_region
      _
    $region5: #{tpu_custom_call.1} parent=1 // pred_fallthru
      _
    // Predicated region
    $region6: #{tpu_custom_call.1} parent=1 // pred_check
      _
    $region7: #{tpu_custom_call.1} parent=1 // pred_check_branch
      %14 = sbr.rel (0) target = $region9
    $region8: #{tpu_custom_call.1} parent=1 // pred_region
      %s16 = ssub.s32 2048, 2048
      %17 = vsyncadd [#allocation3], %s16
      %s18 = sshll.u32 [#allocation2], 4
      %s19 = int_to_ptr.vmem [resolvable:$true] %s18
      %24 = dma.hbm_to_vmem [thread:$0]  %s1, 2048, %s19, [#allocation3], 128, 128, 8
    $region9: #{tpu_custom_call.1} parent=1 // pred_fallthru
      _
    // Predicated region
    $region10: #{tpu_custom_call.1} parent=1 // pred_check
      _
    $region11: #{tpu_custom_call.1} parent=1 // pred_check_branch
      %26 = sbr.rel (0) target = $region13
    $region12: #{tpu_custom_call.1} parent=1 // pred_region
      _
    $region13: #{tpu_custom_call.1} parent=1 // pred_fallthru
      _
    // Predicated region
    $region14: #{tpu_custom_call.1} parent=1 // pred_check
      _
    $region15: #{tpu_custom_call.1} parent=1 // pred_check_branch
      %28 = sbr.rel (0) target = $region17
    $region16: #{tpu_custom_call.1} parent=1 // pred_region
      _
    $region17: #{tpu_custom_call.1} parent=1 // pred_fallthru
      _
    // Predicated region
    $region18: #{tpu_custom_call.1} parent=1 // pred_check
      _
    $region19: #{tpu_custom_call.1} parent=1 // pred_check_branch
      %30 = sbr.rel (0) target = $region21
    $region20: #{tpu_custom_call.1} parent=1 // pred_region
      %31 = dma.done [#allocation3], 2048
    $region21: #{tpu_custom_call.1} parent=1 // pred_fallthru
      _
    %v32 = vld [vmem:[%s0] sm:$0xff]
    %v33 = vld [vmem:[#allocation2] sm:$0xff]
    %v34 = vld [vmem:[#allocation2 + $0x8] sm:$0xff]
    %v35 = vld [vmem:[#allocation2 + $0x10] sm:$0xff]
    %v36 = vld [vmem:[#allocation2 + $0x18] sm:$0xff]
    %v37 = vld [vmem:[#allocation2 + $0x20] sm:$0xff]
    %v38 = vld [vmem:[#allocation2 + $0x28] sm:$0xff]
    %v39 = vld [vmem:[#allocation2 + $0x30] sm:$0xff]
    %v40 = vld [vmem:[#allocation2 + $0x38] sm:$0xff]
    %v41 = vld [vmem:[#allocation2 + $0x40] sm:$0xff]
    %v42 = vld [vmem:[#allocation2 + $0x48] sm:$0xff]
    %v43 = vld [vmem:[#allocation2 + $0x50] sm:$0xff]
    %v44 = vld [vmem:[#allocation2 + $0x58] sm:$0xff]
    %v45 = vld [vmem:[#allocation2 + $0x60] sm:$0xff]
    %v46 = vld [vmem:[#allocation2 + $0x68] sm:$0xff]
    %v47 = vld [vmem:[#allocation2 + $0x70] sm:$0xff]
    %v48 = vld [vmem:[#allocation2 + $0x78] sm:$0xff]
    %49 = vmatprep.subr.mxu0 0.0
    %50 = vmatpush1.msra.mxu0 %v33
    %51 = vmatprep.subr.mxu0 0.0
    %52 = vmatpush1.msra.mxu0 %v34
    %53 = vmatprep.subr.mxu0 0.0
    %54 = vmatpush1.msra.mxu0 %v35
    %55 = vmatprep.subr.mxu0 0.0
    %56 = vmatpush1.msra.mxu0 %v36
    %57 = vmatprep.subr.mxu0 0.0
    %58 = vmatpush1.msra.mxu0 %v37
    %59 = vmatprep.subr.mxu0 0.0
    %60 = vmatpush1.msra.mxu0 %v38
    %61 = vmatprep.subr.mxu0 0.0
    %62 = vmatpush1.msra.mxu0 %v39
    %63 = vmatprep.subr.mxu0 0.0
    %64 = vmatpush1.msra.mxu0 %v40
    %65 = vmatprep.subr.mxu0 0.0
    %66 = vmatpush1.msra.mxu0 %v41
    %67 = vmatprep.subr.mxu0 0.0
    %68 = vmatpush1.msra.mxu0 %v42
    %69 = vmatprep.subr.mxu0 0.0
    %70 = vmatpush1.msra.mxu0 %v43
    %71 = vmatprep.subr.mxu0 0.0
    %72 = vmatpush1.msra.mxu0 %v44
    %73 = vmatprep.subr.mxu0 0.0
    %74 = vmatpush1.msra.mxu0 %v45
    %75 = vmatprep.subr.mxu0 0.0
    %76 = vmatpush1.msra.mxu0 %v46
    %77 = vmatprep.subr.mxu0 0.0
    %78 = vmatpush1.msra.mxu0 %v47
    %79 = vmatprep.subr.mxu0 0.0
    %80 = vmatpush1.msra.mxu0 %v48
    %81 = vmatprep.subr.mxu0 0.0
    %82 = vmatpush1.msra.mxu0 0.0
    %83 = vmatprep.subr.mxu0 0.0
    %84 = vmatpush1.msra.mxu0 0.0
    %85 = vmatprep.subr.mxu0 0.0
    %86 = vmatpush1.msra.mxu0 0.0
    %87 = vmatprep.subr.mxu0 0.0
    %88 = vmatpush1.msra.mxu0 0.0
    %89 = vmatprep.subr.mxu0 0.0
    %90 = vmatpush1.msra.mxu0 0.0
    %91 = vmatprep.subr.mxu0 0.0
    %92 = vmatpush1.msra.mxu0 0.0
    %93 = vmatprep.subr.mxu0 0.0
    %94 = vmatpush1.msra.mxu0 0.0
    %95 = vmatprep.subr.mxu0 0.0
    %96 = vmatpush1.msra.mxu0 0.0
    %97 = vmatprep.subr.mxu0 0.0
    %98 = vmatpush1.msra.mxu0 0.0
    %99 = vmatprep.subr.mxu0 0.0
    %100 = vmatpush1.msra.mxu0 0.0
    %101 = vmatprep.subr.mxu0 0.0
    %102 = vmatpush1.msra.mxu0 0.0
    %103 = vmatprep.subr.mxu0 0.0
    %104 = vmatpush1.msra.mxu0 0.0
    %105 = vmatprep.subr.mxu0 0.0
    %106 = vmatpush1.msra.mxu0 0.0
    %107 = vmatprep.subr.mxu0 0.0
    %108 = vmatpush1.msra.mxu0 0.0
    %109 = vmatprep.subr.mxu0 0.0
    %110 = vmatpush1.msra.mxu0 0.0
    %111 = vmatprep.subr.mxu0 0.0
    %112 = vmatpush1.msra.mxu0 0.0
    %113 = vmatprep.mubr.f32.mxu0 0.0
    %114 = vmatmul.mubr.f32.gmra.mrb[0].mxu0 %v32
    %v115 = vpop.f32.mrb[0].mxu0
    %v116 = vadd.f32 0.0, %v115
    %v117 = vpop.f32.mrb[0].mxu0
    %118 = vdwg.mxu0
    %v119 = vld [vmem:[%s2] sm:$0xff]
    %121 = vset.pattern.permute.xlu0 0
    %122 = vperm.xlu0 %121, %v119
    %v123 = vpop.permute.xlu0 %122
    %v125 = vmul.f32 %v116, %v123
    %v126 = vld [vmem:[%s3] sm:$0x1]
    %v128 = vlaneseq
    %v129 = vshrl.u32 %v128, 7
    %v130 = vsub.s32 0, %v129
    %v131 = vrot.slane %v126, %v130
    %v133 = vmul.f32 %v125, %v131
    %134 = vst [vmem:[#allocation5] sm:$0xff] %v133
    // Predicated region
    $region22: #{tpu_custom_call.1} parent=1 // pred_check
      _
    $region23: #{tpu_custom_call.1} parent=1 // pred_check_branch
      %136 = sbr.rel (0) target = $region25
    $region24: #{tpu_custom_call.1} parent=1 // pred_region
      %s138 = ssub.s32 128, 128
      %139 = vsyncadd [#allocation4], %s138
      %s141 = sshll.u32 [#allocation5], 4
      %s142 = int_to_ptr.vmem [resolvable:$true] %s141
      %144 = dma.vmem_to_hbm [thread:$0]  %s142, 128, %s4, [#allocation4]
    $region25: #{tpu_custom_call.1} parent=1 // pred_fallthru
      _
    // Predicated region
    $region26: #{tpu_custom_call.1} parent=1 // pred_check
      _
    $region27: #{tpu_custom_call.1} parent=1 // pred_check_branch
      %146 = sbr.rel (0) target = $region29
    $region28: #{tpu_custom_call.1} parent=1 // pred_region
      %147 = dma.done [#allocation4], 128
    $region29: #{tpu_custom_call.1} parent=1 // pred_fallthru
      _
    %148 = vsyncpa [#allocation3], 1
    %149 = vsyncpa [#allocation4], 1

</llo_original>
